<compile_context>
chip_gen: v6e
topology: v6e:2x2x1
jax: 0.10.0
libtpu: 0.0.40
codegen_flags: <defaults>
</compile_context>

<pallas_src>
import functools

import jax
import jax.numpy as jnp
from jax.experimental import pallas as pl
from jax.experimental.pallas import tpu as pltpu

EPS_IN = 1e-3   # InstanceNorm2d eps (explicit in the module)
EPS_BN = 1e-5   # BatchNorm2d default eps
_LANES = 128


# --------------------------------- helpers ----------------------------------

def _lane_partial_sums(v):
    """(R, T) f32 -> ((R,128) sum, (R,128) sum-of-squares) lane-wise partials.

    T is a static multiple of 128.  Pure VPU adds on lane-aligned slices; the
    cross-lane XLU reduction is deferred to the final grid step.
    """
    _, t = v.shape
    ps = v[:, 0:_LANES]
    pq = ps * ps
    for k in range(1, t // _LANES):
        c = v[:, k * _LANES:(k + 1) * _LANES]
        ps = ps + c
        pq = pq + c * c
    return ps, pq


def _pad_mask(pj, tile_p, p_true):
    """(1, tile_p) bool mask of columns that are real (not zero padding)."""
    valid = p_true - pj * tile_p                 # padding only in the last tile
    lane = jax.lax.broadcasted_iota(jnp.int32, (1, tile_p), 1)
    return lane < valid


# --------------------------------- kernels ----------------------------------

def _stats_kernel(x_ref, sum_ref, sq_ref, acc_s, acc_q):
    """Per-(n,c) sum / sum-of-squares of x over the spatial axis."""
    pj = pl.program_id(1)

    @pl.when(pj == 0)
    def _():
        acc_s[...] = jnp.zeros_like(acc_s)
        acc_q[...] = jnp.zeros_like(acc_q)

    # Zero padding contributes 0 to both sums, so no mask is needed here.
    ps, pq = _lane_partial_sums(x_ref[0])
    acc_s[...] += ps
    acc_q[...] += pq

    @pl.when(pj == pl.num_programs(1) - 1)
    def _():
        sum_ref[0] = jnp.sum(acc_s[...], axis=-1, keepdims=True)
        sq_ref[0] = jnp.sum(acc_q[...], axis=-1, keepdims=True)


def _stage1_kernel(x_ref, a_ref, b_ref, w_ref, bias_ref,
                   y_ref, sum_ref, sq_ref, acc_s, acc_q, *, p_true, padded):
    """y1 = conv1x1(relu(x*a + b)); y1 stored bf16; per-(n,c) stats of y1 (f32)."""
    pj = pl.program_id(1)
    tile_p = x_ref.shape[2]

    @pl.when(pj == 0)
    def _():
        acc_s[...] = jnp.zeros_like(acc_s)
        acc_q[...] = jnp.zeros_like(acc_q)

    x = x_ref[0]                                           # (C, TILE_P) f32
    # Folded InstanceNorm + BatchNorm + affine, then ReLU (f32 on the VPU).
    h = jnp.maximum(x * a_ref[0] + b_ref[0], 0.0)
    # 1x1 conv on the MXU: bf16 inputs (weights pre-cast), f32 accumulation.
    y = jnp.dot(w_ref[...], h.astype(jnp.bfloat16),
                preferred_element_type=jnp.float32)        # (O, TILE_P) f32
    y = y + bias_ref[...]                                  # (O, 1) broadcast

    y_ref[0] = y.astype(y_ref.dtype)                       # bf16 to HBM

    # Stats come from the f32 accumulator; padded columns (y == bias) masked.
    y_stats = y
    if padded:
        y_stats = jnp.where(_pad_mask(pj, tile_p, p_true), y, 0.0)
    ps, pq = _lane_partial_sums(y_stats)
    acc_s[...] += ps
    acc_q[...] += pq

    @pl.when(pj == pl.num_programs(1) - 1)
    def _():
        sum_ref[0] = jnp.sum(acc_s[...], axis=-1, keepdims=True)
        sq_ref[0] = jnp.sum(acc_q[...], axis=-1, keepdims=True)


def _stage2_compute(y1_ref, x_ref, a_ref, b_ref, w_ref, bias_ref):
    """out = conv1x1(relu(y1*a + b)) + bias + x   (residual).  y1 is bf16."""
    h = jnp.maximum(y1_ref[0].astype(jnp.float32) * a_ref[0] + b_ref[0], 0.0)
    y = jnp.dot(w_ref[...], h.astype(jnp.bfloat16),
                preferred_element_type=jnp.float32)
    return y + bias_ref[...] + x_ref[0]


def _stage2_kernel(y1_ref, x_ref, a_ref, b_ref, w_ref, bias_ref, o_ref):
    o_ref[0] = _stage2_compute(y1_ref, x_ref, a_ref, b_ref, w_ref, bias_ref)


def _stage2_stats_kernel(y1_ref, x_ref, a_ref, b_ref, w_ref, bias_ref,
                         o_ref, sum_ref, sq_ref, acc_s, acc_q,
                         *, p_true, padded):
    """Stage 2 that additionally emits per-(n,c) stats of its output, so a
    following (stacked) PointCN block can skip its own x-stats pass."""
    pj = pl.program_id(1)
    tile_p = x_ref.shape[2]

    @pl.when(pj == 0)
    def _():
        acc_s[...] = jnp.zeros_like(acc_s)
        acc_q[...] = jnp.zeros_like(acc_q)

    out = _stage2_compute(y1_ref, x_ref, a_ref, b_ref, w_ref, bias_ref)
    o_ref[0] = out

    if padded:
        out = jnp.where(_pad_mask(pj, tile_p, p_true), out, 0.0)
    ps, pq = _lane_partial_sums(out)
    acc_s[...] += ps
    acc_q[...] += pq

    @pl.when(pj == pl.num_programs(1) - 1)
    def _():
        sum_ref[0] = jnp.sum(acc_s[...], axis=-1, keepdims=True)
        sq_ref[0] = jnp.sum(acc_q[...], axis=-1, keepdims=True)


# --------------------------------- wrapper ----------------------------------

def _fold_in_bn(s, sq, gamma, beta, p):
    """Fold InstanceNorm + training-mode BatchNorm + affine into per-(n,c) a,b.

    After IN every (n,c) slice has exactly zero spatial mean, so BN's batch mean
    is exactly 0 and its biased batch variance is mean_n[var/(var+eps_in)].
    Result: IN+BN+affine(x) == x*a + b with a,b per (n,c).
    """
    mu = s / p                                             # (N, C)
    # One-pass variance (clamped); adequate for roughly zero-mean inputs.
    var = jnp.maximum(sq / p - mu * mu, 0.0)
    inv_in = jax.lax.rsqrt(var + EPS_IN)                   # IN scale
    bn_var = jnp.mean(var * inv_in * inv_in, axis=0)       # (C,)
    bn_scale = gamma * jax.lax.rsqrt(bn_var + EPS_BN)      # (C,)
    a = inv_in * bn_scale[None, :]
    b = beta[None, :] - mu * a
    return a, b


def pointcn_forward(x_nchw, params, *, tile_p=None, x_stats=None,
                    return_out_stats=False):
    """x_nchw: (N, C, H, W) float32. Returns (N, C, H, W).

    x_stats: optional (sum, sq) of shape (N, C, 1) from a previous block's
      `return_out_stats=True` call -- skips this block's stats pass.
    return_out_stats: also return per-(n,c) (sum, sq) of the output, for
      chaining stacked PointCN blocks.
    """
    w1, b1, g1, be1, w2, b2, g2, be2 = params
    N, C, H, W = x_nchw.shape
    O = w1.shape[0]
    assert O == C, "residual add requires out_channels == channels"
    P = H * W

    # ---- tiling / padding (lane-dense spatial axis) -------------------------
    if tile_p is None:
        p_pad = ((P + _LANES - 1) // _LANES) * _LANES
        tile_p = next(t for t in (8192, 4096, 2048, 1024, 512, 256, 128)
                      if t <= p_pad and p_pad % t == 0)
    else:
        assert tile_p % _LANES == 0, "tile_p must be a multiple of 128"
        p_pad = ((P + tile_p - 1) // tile_p) * tile_p
    padded = p_pad != P
    grid = (N, p_pad // tile_p)

    f32, bf16 = jnp.float32, jnp.bfloat16
    x = x_nchw.reshape(N, C, P).astype(f32)       # NCHW -> (N,C,P): free reshape
    if padded:
        x = jnp.pad(x, ((0, 0), (0, 0), (0, p_pad - P)))

    # Pre-cast weights to bf16 (grid-resident; avoids per-step VPU casts).
    w1b = w1.astype(bf16)
    w2b = w2.astype(bf16)
    b1c = b1.reshape(O, 1).astype(f32)
    b2c = b2.reshape(O, 1).astype(f32)

    # Block specs. Weights/biases and the per-sample scale/shift vectors keep a
    # constant block index, so they stay VMEM-resident across the pipeline.
    act_c = pl.BlockSpec((1, C, tile_p), lambda n, pj: (n, 0, pj))
    act_o = pl.BlockSpec((1, O, tile_p), lambda n, pj: (n, 0, pj))
    vec_c = pl.BlockSpec((1, C, 1), lambda n, pj: (n, 0, 0))
    vec_o = pl.BlockSpec((1, O, 1), lambda n, pj: (n, 0, 0))
    w_sp = pl.BlockSpec((O, C), lambda n, pj: (0, 0))     # O == C
    bias_sp = pl.BlockSpec((O, 1), lambda n, pj: (0, 0))

    # Explicit scoped-VMEM limit: stage 2 streams y1(bf16)+x(f32)+out(f32),
    # double-buffered.  Clamp to 48 MiB (below v7x's 64 MiB physical VMEM).
    blk = tile_p * max(C, O)
    vmem_limit = int(min(max(2 * 10 * blk + (2 << 20), 32 << 20), 48 << 20))

    red = pltpu.CompilerParams(                     # pj accumulates statistics
        dimension_semantics=("parallel", "arbitrary"),
        vmem_limit_bytes=vmem_limit)
    par = pltpu.CompilerParams(                     # fully parallel (megacore)
        dimension_semantics=("parallel", "parallel"),
        vmem_limit_bytes=vmem_limit)

    matmul_cost = pl.CostEstimate(
        flops=2 * N * p_pad * C * O, transcendentals=0,
        bytes_accessed=6 * N * C * p_pad + 4 * N * O * p_pad + 2 * C * O)

    # ---- pass 1: per-(n,c) stats of x (skipped when chained from a previous
    #      block whose stage-2 already produced them) -------------------------
    if x_stats is None:
        s1, q1 = pl.pallas_call(
            _stats_kernel,
            out_shape=(jax.ShapeDtypeStruct((N, C, 1), f32),
                       jax.ShapeDtypeStruct((N, C, 1), f32)),
            grid=grid,
            in_specs=[act_c],
            out_specs=(vec_c, vec_c),
            scratch_shapes=[pltpu.VMEM((C, _LANES), f32),
                            pltpu.VMEM((C, _LANES), f32)],
            compiler_params=red,
        )(x)
    else:
        s1, q1 = x_stats
    a1, sh1 = _fold_in_bn(s1[..., 0], q1[..., 0], g1, be1, P)

    # ---- pass 2: fused IN1+BN1+ReLU+conv1 -> y1 (bf16) + per-(n,c) y1 stats --
    stage1 = functools.partial(_stage1_kernel, p_true=P, padded=padded)
    y1, s2, q2 = pl.pallas_call(
        stage1,
        out_shape=(jax.ShapeDtypeStruct((N, O, p_pad), bf16),
                   jax.ShapeDtypeStruct((N, O, 1), f32),
                   jax.ShapeDtypeStruct((N, O, 1), f32)),
        grid=grid,
        in_specs=[act_c, vec_c, vec_c, w_sp, bias_sp],
        out_specs=(act_o, vec_o, vec_o),
        scratch_shapes=[pltpu.VMEM((O, _LANES), f32),
                        pltpu.VMEM((O, _LANES), f32)],
        compiler_params=red,
        cost_estimate=matmul_cost,
    )(x, a1.reshape(N, C, 1), sh1.reshape(N, C, 1), w1b, b1c)
    a2, sh2 = _fold_in_bn(s2[..., 0], q2[..., 0], g2, be2, P)

    # ---- pass 3: fused IN2+BN2+ReLU+conv2 + residual -------------------------
    stage2_in = [act_o, act_c, vec_o, vec_o, w_sp, bias_sp]
    stage2_args = (y1, x, a2.reshape(N, O, 1), sh2.reshape(N, O, 1), w2b, b2c)

    if return_out_stats:
        stage2 = functools.partial(_stage2_stats_kernel, p_true=P, padded=padded)
        out, so, qo = pl.pallas_call(
            stage2,
            out_shape=(jax.ShapeDtypeStruct((N, O, p_pad), f32),
                       jax.ShapeDtypeStruct((N, O, 1), f32),
                       jax.ShapeDtypeStruct((N, O, 1), f32)),
            grid=grid,
            in_specs=stage2_in,
            out_specs=(act_o, vec_o, vec_o),
            scratch_shapes=[pltpu.VMEM((O, _LANES), f32),
                            pltpu.VMEM((O, _LANES), f32)],
            compiler_params=red,
            cost_estimate=matmul_cost,
        )(*stage2_args)
    else:
        out = pl.pallas_call(
            _stage2_kernel,
            out_shape=jax.ShapeDtypeStruct((N, O, p_pad), f32),
            grid=grid,
            in_specs=stage2_in,
            out_specs=act_o,
            compiler_params=par,
            cost_estimate=matmul_cost,
        )(*stage2_args)

    out_nchw = (out[..., :P] if padded else out).reshape(N, O, H, W)
    if return_out_stats:
        return out_nchw, (so, qo)
    return out_nchw


# ------------------------------- reference ----------------------------------

def reference_forward(x, params):
    """Pure-JAX f32 reference of the PyTorch forward (NCHW, HIGHEST precision)."""
    w1, b1, g1, be1, w2, b2, g2, be2 = params
    hp = jax.lax.Precision.HIGHEST

    def inorm(h):
        mu = h.mean(axis=(2, 3), keepdims=True)
        var = ((h - mu) ** 2).mean(axis=(2, 3), keepdims=True)
        return (h - mu) / jnp.sqrt(var + EPS_IN)

    def bnorm(h, g, b):
        mu = h.mean(axis=(0, 2, 3), keepdims=True)
        var = ((h - mu) ** 2).mean(axis=(0, 2, 3), keepdims=True)
        return ((h - mu) / jnp.sqrt(var + EPS_BN) * g.reshape(1, -1, 1, 1)
                + b.reshape(1, -1, 1, 1))

    h = jnp.maximum(bnorm(inorm(x), g1, be1), 0.0)
    h = jnp.einsum('nchw,oc->nohw', h, w1, precision=hp) + b1.reshape(1, -1, 1, 1)
    h = jnp.maximum(bnorm(inorm(h), g2, be2), 0.0)
    h = jnp.einsum('nchw,oc->nohw', h, w2, precision=hp) + b2.reshape(1, -1, 1, 1)
    return h + x


def init_params(key, channels, out_channels):
    ks = jax.random.split(key, 8)
    # Conv2d(C,O,1) weight is (O, C, 1, 1) in torch; stored here as (O, C).
    w1 = 0.2 * jax.random.normal(ks[0], (out_channels, channels), jnp.float32)
    b1 = 0.1 * jax.random.normal(ks[1], (out_channels,), jnp.float32)
    w2 = 0.2 * jax.random.normal(ks[2], (out_channels, out_channels), jnp.float32)
    b2 = 0.1 * jax.random.normal(ks[3], (out_channels,), jnp.float32)
    g1 = 1.0 + 0.1 * jax.random.normal(ks[4], (channels,), jnp.float32)
    be1 = 0.1 * jax.random.normal(ks[5], (channels,), jnp.float32)
    g2 = 1.0 + 0.1 * jax.random.normal(ks[6], (out_channels,), jnp.float32)
    be2 = 0.1 * jax.random.normal(ks[7], (out_channels,), jnp.float32)
    return (w1, b1, g1, be1, w2, b2, g2, be2)


if __name__ == "__main__":
    key = jax.random.PRNGKey(0)
    kx, kp, kp2 = jax.random.split(key, 3)

    # N >= 2 so the batch "parallel" axis keeps both v7x TensorCores busy.
    N, C, H, W = 2, 4, 16, 16
    x = jax.random.normal(kx, (N, C, H, W), jnp.float32)
    params = init_params(kp, C, C)        # residual needs out_channels == channels
    ref = reference_forward(x, params)

    # Default (single spatial tile) and an explicit 128-wide tile that exercises
    # multi-step pipelining + cross-tile statistic accumulation.
    # Tolerance note: accuracy is bounded by bf16 MXU inputs and the bf16 y1
    # store; with C=4 the second InstanceNorm divides by a small spatial std,
    # amplifying that rounding -- real layout/fold bugs produce O(1) errors.
    for tp in (None, 128):
        out = jax.block_until_ready(pointcn_forward(x, params, tile_p=tp))
        assert out.shape == (N, C, H, W)
        err = float(jnp.max(jnp.abs(out - ref)))
        assert err < 1e-1, f"mismatch vs reference (tile_p={tp}): {err}"

    # Non-128-divisible spatial size -> padded / lane-masked-stats path.
    x2 = jax.random.normal(kx, (N, C, 10, 10), jnp.float32)
    ref2 = reference_forward(x2, params)
    out2 = jax.block_until_ready(pointcn_forward(x2, params))
    err2 = float(jnp.max(jnp.abs(out2 - ref2)))
    assert err2 < 1e-1, f"mismatch on padded path: {err2}"

    # Stacked blocks: block 1's stage-2 emits the x-stats of block 2, which then
    # skips its own stats pass (one fewer full HBM read of x per block).
    params_b = init_params(kp2, C, C)
    o1, stats = pointcn_forward(x, params, return_out_stats=True)
    o2 = jax.block_until_ready(pointcn_forward(o1, params_b, x_stats=stats))
    ref_b2 = reference_forward(o1, params_b)   # isolates block-2 + chaining error
    err3 = float(jnp.max(jnp.abs(o2 - ref_b2)))
    assert err3 < 1e-1, f"mismatch on stacked/x_stats path: {err3}"

    print("KERNEL_OK")
</pallas_src>

<mosaic_0001>
module attributes {stable_mosaic.version = 11 : i64} {
  func.func @_stats_kernel(%arg0: i32, %arg1: i32, %arg2: memref<1x4x256xf32, #tpu.memory_space<vmem>>, %arg3: memref<1x4x1xf32, #tpu.memory_space<vmem>>, %arg4: memref<1x4x1xf32, #tpu.memory_space<vmem>>, %arg5: memref<4x128xf32, #tpu.memory_space<vmem>>, %arg6: memref<4x128xf32, #tpu.memory_space<vmem>>) attributes {dimension_semantics = [#tpu.dimension_semantics<parallel>, #tpu.dimension_semantics<arbitrary>], iteration_bounds = array<i64: 2, 1>, scalar_prefetch = 0 : i64, scratch_operands = 2 : i64, tpu.core_type = #tpu.core_type<tc>, window_params = [{transform_indices = @transform_0, window_bounds = array<i64: 1, 4, 256>}, {transform_indices = @transform_1, window_bounds = array<i64: 1, 4, 1>}, {transform_indices = @transform_2, window_bounds = array<i64: 1, 4, 1>}]} {
    %c0_i32 = arith.constant 0 : i32
    %0 = arith.cmpi eq, %arg1, %c0_i32 : i32
    %1 = arith.extui %0 : i1 to i32
    %c0_i32_0 = arith.constant 0 : i32
    %2 = arith.cmpi ne, %1, %c0_i32_0 : i32
    scf.if %2 {
      %cst = arith.constant 0.000000e+00 : f32
      %20 = vector.broadcast %cst : f32 to vector<4x128xf32>
      %c0_13 = arith.constant 0 : index
      %c0_14 = arith.constant 0 : index
      %21 = vector.load %arg5[%c0_13, %c0_14] : memref<4x128xf32, #tpu.memory_space<vmem>>, vector<4x128xf32>
      tpu.vector_store %arg5[%c0_13, %c0_14], %20 {strides = array<i32>} : memref<4x128xf32, #tpu.memory_space<vmem>>, vector<4x128xf32>,
      %cst_15 = arith.constant 0.000000e+00 : f32
      %22 = vector.broadcast %cst_15 : f32 to vector<4x128xf32>
      %c0_16 = arith.constant 0 : index
      %c0_17 = arith.constant 0 : index
      %23 = vector.load %arg6[%c0_16, %c0_17] : memref<4x128xf32, #tpu.memory_space<vmem>>, vector<4x128xf32>
      tpu.vector_store %arg6[%c0_16, %c0_17], %22 {strides = array<i32>} : memref<4x128xf32, #tpu.memory_space<vmem>>, vector<4x128xf32>,
    } else {
    }
    %c0 = arith.constant 0 : index
    %c0_1 = arith.constant 0 : index
    %c0_2 = arith.constant 0 : index
    %3 = vector.load %arg2[%c0, %c0_1, %c0_2] : memref<1x4x256xf32, #tpu.memory_space<vmem>>, vector<1x4x256xf32>
    %4 = vector.shape_cast %3 : vector<1x4x256xf32> to vector<4x256xf32>
    %5 = vector.extract_strided_slice %4 {offsets = [0, 0], sizes = [4, 128], strides = [1, 1]} : vector<4x256xf32> to vector<4x128xf32>
    %6 = arith.mulf %5, %5 : vector<4x128xf32>
    %7 = vector.extract_strided_slice %4 {offsets = [0, 128], sizes = [4, 128], strides = [1, 1]} : vector<4x256xf32> to vector<4x128xf32>
    %8 = arith.addf %5, %7 : vector<4x128xf32>
    %9 = arith.mulf %7, %7 : vector<4x128xf32>
    %10 = arith.addf %6, %9 : vector<4x128xf32>
    %c0_3 = arith.constant 0 : index
    %c0_4 = arith.constant 0 : index
    %11 = vector.load %arg5[%c0_3, %c0_4] : memref<4x128xf32, #tpu.memory_space<vmem>>, vector<4x128xf32>
    %12 = arith.addf %11, %8 : vector<4x128xf32>
    %c0_5 = arith.constant 0 : index
    %c0_6 = arith.constant 0 : index
    %13 = vector.load %arg5[%c0_5, %c0_6] : memref<4x128xf32, #tpu.memory_space<vmem>>, vector<4x128xf32>
    tpu.vector_store %arg5[%c0_5, %c0_6], %12 {strides = array<i32>} : memref<4x128xf32, #tpu.memory_space<vmem>>, vector<4x128xf32>,
    %c0_7 = arith.constant 0 : index
    %c0_8 = arith.constant 0 : index
    %14 = vector.load %arg6[%c0_7, %c0_8] : memref<4x128xf32, #tpu.memory_space<vmem>>, vector<4x128xf32>
    %15 = arith.addf %14, %10 : vector<4x128xf32>
    %c0_9 = arith.constant 0 : index
    %c0_10 = arith.constant 0 : index
    %16 = vector.load %arg6[%c0_9, %c0_10] : memref<4x128xf32, #tpu.memory_space<vmem>>, vector<4x128xf32>
    tpu.vector_store %arg6[%c0_9, %c0_10], %15 {strides = array<i32>} : memref<4x128xf32, #tpu.memory_space<vmem>>, vector<4x128xf32>,
    %c0_i32_11 = arith.constant 0 : i32
    %17 = arith.cmpi eq, %arg1, %c0_i32_11 : i32
    %18 = arith.extui %17 : i1 to i32
    %c0_i32_12 = arith.constant 0 : i32
    %19 = arith.cmpi ne, %18, %c0_i32_12 : i32
    scf.if %19 {
      %c0_13 = arith.constant 0 : index
      %c0_14 = arith.constant 0 : index
      %20 = vector.load %arg5[%c0_13, %c0_14] : memref<4x128xf32, #tpu.memory_space<vmem>>, vector<4x128xf32>
      %cst = arith.constant dense<0.000000e+00> : vector<4xf32>
      %21 = vector.multi_reduction <add>, %20, %cst [1] : vector<4x128xf32> to vector<4xf32>
      %22 = vector.shape_cast %21 : vector<4xf32> to vector<4x1xf32>
      %c0_15 = arith.constant 0 : index
      %c0_16 = arith.constant 0 : index
      %c0_17 = arith.constant 0 : index
      %23 = vector.load %arg3[%c0_15, %c0_16, %c0_17] : memref<1x4x1xf32, #tpu.memory_space<vmem>>, vector<1x4x1xf32>
      %24 = vector.shape_cast %23 : vector<1x4x1xf32> to vector<4x1xf32>
      %25 = vector.shape_cast %22 : vector<4x1xf32> to vector<1x4x1xf32>
      tpu.vector_store %arg3[%c0_15, %c0_16, %c0_17], %25 {strides = array<i32>} : memref<1x4x1xf32, #tpu.memory_space<vmem>>, vector<1x4x1xf32>,
      %c0_18 = arith.constant 0 : index
      %c0_19 = arith.constant 0 : index
      %26 = vector.load %arg6[%c0_18, %c0_19] : memref<4x128xf32, #tpu.memory_space<vmem>>, vector<4x128xf32>
      %cst_20 = arith.constant dense<0.000000e+00> : vector<4xf32>
      %27 = vector.multi_reduction <add>, %26, %cst_20 [1] : vector<4x128xf32> to vector<4xf32>
      %28 = vector.shape_cast %27 : vector<4xf32> to vector<4x1xf32>
      %c0_21 = arith.constant 0 : index
      %c0_22 = arith.constant 0 : index
      %c0_23 = arith.constant 0 : index
      %29 = vector.load %arg4[%c0_21, %c0_22, %c0_23] : memref<1x4x1xf32, #tpu.memory_space<vmem>>, vector<1x4x1xf32>
      %30 = vector.shape_cast %29 : vector<1x4x1xf32> to vector<4x1xf32>
      %31 = vector.shape_cast %28 : vector<4x1xf32> to vector<1x4x1xf32>
      tpu.vector_store %arg4[%c0_21, %c0_22, %c0_23], %31 {strides = array<i32>} : memref<1x4x1xf32, #tpu.memory_space<vmem>>, vector<1x4x1xf32>,
    } else {
    }
    return
  }
  func.func @transform_0(%arg0: i32, %arg1: i32) -> (i32, i32, i32) {
    %c0_i32 = arith.constant 0 : i32
    %c0_i32_0 = arith.constant 0 : i32
    return %arg0, %c0_i32, %arg1 : i32, i32, i32
  }
  func.func @transform_1(%arg0: i32, %arg1: i32) -> (i32, i32, i32) {
    %c0_i32 = arith.constant 0 : i32
    %c0_i32_0 = arith.constant 0 : i32
    %c0_i32_1 = arith.constant 0 : i32
    return %arg0, %c0_i32, %c0_i32_0 : i32, i32, i32
  }
  func.func @transform_2(%arg0: i32, %arg1: i32) -> (i32, i32, i32) {
    %c0_i32 = arith.constant 0 : i32
    %c0_i32_0 = arith.constant 0 : i32
    %c0_i32_1 = arith.constant 0 : i32
    return %arg0, %c0_i32, %c0_i32_0 : i32, i32, i32
  }
}

</mosaic_0001>

<llo_original>
// kernel: tpu_custom_call.1
$region0: #{tpu_custom_call.1}
  #allocation0 [shape = 'u32[]', space=smem, size = 0x4, offset = 0x4, fixed_abs, tag = 'smem constant byte address 0x4 - core index']
  #allocation1 [shape = 'u32[144,128]{1,0:T(1,128)}', space=vmem, size = 0x12000, scoped, tag = 'internal scratch']
  #allocation2 [shape = 'f32[4,128]{1,0:T(4,128)}', space=vmem, size = 0x800, scoped, tag = 'scratch operand']
  #allocation3 [shape = 'f32[4,128]{1,0:T(4,128)}', space=vmem, size = 0x800, scoped, tag = 'scratch operand']
  %s0 = inlined_call_operand.hbm [shape: f32[2,4,256], index: 0, kind: input, shape index: {}]
  %s1 = inlined_call_operand.vmem [shape: f32[2,4,1], index: 1, kind: output, shape index: {0}]
  %s2 = inlined_call_operand.vmem [shape: f32[2,4,1], index: 2, kind: output, shape index: {1}]
  %3 = xla_tuple %s1, %s2
  %s4 = sld [smem:[#allocation0]]
  $region57: #{tpu_custom_call.1} parent=0
    _
  %s6 = ssub.s32 1, %s4
  %s7 = scalar_select 0, %s6, %s4
  $region1: #{tpu_custom_call.1} parent=0
    #allocation4 [shape = 'u8[8192]{0}', space=vmem, size = 0x2000, scoped, tag = 'input window, operand 0']
    #allocation5 [shape = 's32[2]{0}', space=sflag, size = 0x8, scoped, tag = 'scoped memory for tpu_custom_call.1']
    %8 = vsyncpa [#allocation5], 0
    %s9 = scalar_lea.sflag [#allocation5], 1
    %10 = vsyncpa %s9, 0
    loop: start=0, step=1, limit=4
    $region2: #{tpu_custom_call.1} parent=1 // loop_pre_header
      _
    $region3: #{tpu_custom_call.1} parent=1 // loop_header
      %s12 = sphi 0, %s16
      %p13 = scmp.ge.s32.totalorder %s12, 4
      %s19 = sphi 0, %s31
      %s20 = sphi 0, %s27
      %s21 = sphi 0, %s19
      %s22 = sphi 0, %s20
      %s23 = sphi 0, %s21
      %s24 = sphi 0, %s22
      %s36 = sphi 0, %s38
      %s39 = sphi 0, %s36
      %s40 = sphi 0, %s39
      %s56 = sphi 0, %s40
      %s62 = sphi 0, %s64
      %s65 = sphi 0, %s62
      %s66 = sphi 0, %s65
      %s82 = sphi 0, %s66
      %s88 = sphi 0, %s90
      %s91 = sphi 0, %s88
      %s92 = sphi 0, %s91
      %s108 = sphi 0, %s92
    $region4: #{tpu_custom_call.1} parent=1 // loop_header_branch
      %15 = sbr.rel (%p13) target = $region8
    $region5: #{tpu_custom_call.1} parent=1 // loop_body
      %s17 = ssub.s32 %s12, 1
      %s18 = ssub.s32 %s12, 2
      %s25 = sadd.s32 1, %s20
      %p26 = scmp.ge.s32.totalorder %s25, 1
      %s27 = scalar_select %p26, 0, %s25
      %s28 = sadd.s32 1, %s19
      %s29 = scalar_select %p26, %s28, %s19
      %p30 = scmp.ge.s32.totalorder %s29, 2
      %s31 = scalar_select %p30, 0, %s29
      %s32 = ssub.s32 %s19, %s31
      %s33 = ssub.s32 %s20, %s27
      %s34 = sor.u32 %s32, %s33
      %p35 = scmp.eq.s32.totalorder %s34, 0
      %s37 = sadd.s32 %s36, 1
      %s38 = scalar_select %p35, %s36, %s37
      %p41 = pneg %p35
      %p42 = scmp.eq.s32.totalorder %s12, 1
      %p43 = por %p41, %p42
      %p44 = scmp.ne.s32.totalorder %s36, %s39
      %p45 = scmp.eq.s32.totalorder %s12, 0
      %p46 = por %p44, %p45
      %p47 = scmp.ne.s32.totalorder %s36, %s39
      %p48 = scmp.eq.s32.totalorder %s17, 1
      %p49 = por %p47, %p48
      %p50 = scmp.ne.s32.totalorder %s39, %s40
      %p51 = scmp.eq.s32.totalorder %s17, 0
      %p52 = por %p50, %p51
      %p53 = scmp.ne.s32.totalorder %s39, %s40
      %p54 = scmp.eq.s32.totalorder %s18, 1
      %p55 = por %p53, %p54
      %p57 = scmp.ne.s32.totalorder %s40, %s56
      %p58 = scmp.eq.s32.totalorder %s18, 0
      %p59 = por %p57, %p58
      %s60 = ssub.s32 %s19, %s31
      %p61 = scmp.eq.s32.totalorder %s60, 0
      %s63 = sadd.s32 %s62, 1
      %s64 = scalar_select %p61, %s62, %s63
      %p67 = pneg %p61
      %p68 = scmp.eq.s32.totalorder %s12, 1
      %p69 = por %p67, %p68
      %p70 = scmp.ne.s32.totalorder %s62, %s65
      %p71 = scmp.eq.s32.totalorder %s12, 0
      %p72 = por %p70, %p71
      %p73 = scmp.ne.s32.totalorder %s62, %s65
      %p74 = scmp.eq.s32.totalorder %s17, 1
      %p75 = por %p73, %p74
      %p76 = scmp.ne.s32.totalorder %s65, %s66
      %p77 = scmp.eq.s32.totalorder %s17, 0
      %p78 = por %p76, %p77
      %p79 = scmp.ne.s32.totalorder %s65, %s66
      %p80 = scmp.eq.s32.totalorder %s18, 1
      %p81 = por %p79, %p80
      %p83 = scmp.ne.s32.totalorder %s66, %s82
      %p84 = scmp.eq.s32.totalorder %s18, 0
      %p85 = por %p83, %p84
      %s86 = ssub.s32 %s19, %s31
      %p87 = scmp.eq.s32.totalorder %s86, 0
      %s89 = sadd.s32 %s88, 1
      %s90 = scalar_select %p87, %s88, %s89
      %p93 = pneg %p87
      %p94 = scmp.eq.s32.totalorder %s12, 1
      %p95 = por %p93, %p94
      %p96 = scmp.ne.s32.totalorder %s88, %s91
      %p97 = scmp.eq.s32.totalorder %s12, 0
      %p98 = por %p96, %p97
      %p99 = scmp.ne.s32.totalorder %s88, %s91
      %p100 = scmp.eq.s32.totalorder %s17, 1
      %p101 = por %p99, %p100
      %p102 = scmp.ne.s32.totalorder %s91, %s92
      %p103 = scmp.eq.s32.totalorder %s17, 0
      %p104 = por %p102, %p103
      %p105 = scmp.ne.s32.totalorder %s91, %s92
      %p106 = scmp.eq.s32.totalorder %s18, 1
      %p107 = por %p105, %p106
      %p109 = scmp.ne.s32.totalorder %s92, %s108
      %p110 = scmp.eq.s32.totalorder %s18, 0
      %p111 = por %p109, %p110
      %p112 = scmp.le.s32.totalorder 1, %s12
      %p113 = scmp.lt.s32.totalorder %s12, 3
      %p114 = pnand %p112, %p113
      %p115 = pneg %p114
      // Predicated region
      $region9: #{tpu_custom_call.1} parent=5 // pred_check
        _
      $region10: #{tpu_custom_call.1} parent=5 // pred_check_branch
        %117 = sbr.rel (%p114) target = $region12
      $region11: #{tpu_custom_call.1} parent=5 // pred_region
        %s118 = ssub.s32 %s12, 1
      $region12: #{tpu_custom_call.1} parent=5 // pred_fallthru
        _
      %p119 = scmp.lt.s32.totalorder %s12, 2
      // Predicated region
      $region13: #{tpu_custom_call.1} parent=5 // pred_check
        %p120 = pneg %p119
      $region14: #{tpu_custom_call.1} parent=5 // pred_check_branch
        %122 = sbr.rel (%p120) target = $region16
      $region15: #{tpu_custom_call.1} parent=5 // pred_region
        // Predicated region
        $region17: #{tpu_custom_call.1} parent=15 // pred_check
          %p123 = pneg %p46
        $region18: #{tpu_custom_call.1} parent=15 // pred_check_branch
          %125 = sbr.rel (%p123) target = $region20
        $region19: #{tpu_custom_call.1} parent=15 // pred_region
          %s126 = sand.u32 %s36, 1
          %s127 = scalar_lea.sflag [#allocation5], %s126
          %s128 = sand.u32 %s36, 1
          %s129 = smul.addr %s128, 8
          %s130 = scalar_lea.vmem [#allocation4], %s129
          %s131 = smul.u32 2, %s20
          %s133 = ssub.s32 128, 128
          %134 = vsyncadd %s127, %s133
          %s135 = smul.addr %s19, 2
          %s136 = sadd.s32 %s131, %s135
          %s137 = smul.addr %s136, 64
          %s138 = scalar_lea.hbm %s0, %s137
          %s140 = sshll.u32 %s130, 4
          %s141 = int_to_ptr.vmem [resolvable:$true] %s140
          %143 = dma.hbm_to_vmem [thread:$0]  %s138, 128, %s141, %s127
        $region20: #{tpu_custom_call.1} parent=15 // pred_fallthru
          _
      $region16: #{tpu_custom_call.1} parent=5 // pred_fallthru
        _
      %p144 = scmp.le.s32.totalorder 1, %s12
      %p145 = scmp.lt.s32.totalorder %s12, 3
      %p146 = pnand %p144, %p145
      %p147 = pneg %p146
      // Predicated region
      $region21: #{tpu_custom_call.1} parent=5 // pred_check
        _
      $region22: #{tpu_custom_call.1} parent=5 // pred_check_branch
        %149 = sbr.rel (%p146) target = $region24
      $region23: #{tpu_custom_call.1} parent=5 // pred_region
        %s150 = ssub.s32 %s12, 1
        %s151 = sand.u32 %s39, 1
        %s152 = scalar_lea.sflag [#allocation5], %s151
        %s153 = sand.u32 %s39, 1
        %s154 = smul.addr %s153, 8
        %s155 = scalar_lea.vmem [#allocation4], %s154
        // Predicated region
        $region25: #{tpu_custom_call.1} parent=23 // pred_check
          %p156 = pneg %p52
        $region26: #{tpu_custom_call.1} parent=23 // pred_check_branch
          %158 = sbr.rel (%p156) target = $region28
        $region27: #{tpu_custom_call.1} parent=23 // pred_region
          %159 = dma.done %s152, 128
        $region28: #{tpu_custom_call.1} parent=23 // pred_fallthru
          _
        %s160 = sand.u32 %s39, 1
        %s161 = scalar_lea.sflag [#allocation5], %s160
        %s162 = sand.u32 %s39, 1
        %s163 = smul.addr %s162, 8
        %s164 = scalar_lea.vmem [#allocation4], %s163
        %p165 = pneg %p52
        %p166 = pneg %p49
        %p167 = pneg %p78
        %p168 = pneg %p75
        %p169 = scmp.lt.s32.totalorder %s21, 1
        %s170 = scalar_select %p169, %s21, 1
        %s171 = smul.addr %s170, 4
        %s172 = scalar_lea.vmem %s1, %s171
        %p173 = pneg %p104
        %p174 = pneg %p101
        %p175 = scmp.lt.s32.totalorder %s21, 1
        %s176 = scalar_select %p175, %s21, 1
        %s177 = smul.addr %s176, 4
        %s178 = scalar_lea.vmem %s2, %s177
        %s179 = smul.u32 2, %s22
        %p180 = scmp.lt.s32.totalorder %s21, 1
        %s181 = scalar_select %p180, %s21, 1
        %s182 = smul.addr %s181, 4
        %s183 = scalar_lea.vmem %s1, %s182
        %p184 = scmp.lt.s32.totalorder %s21, 1
        %s185 = scalar_select %p184, %s21, 1
        %s186 = smul.addr %s185, 4
        %s187 = scalar_lea.vmem %s2, %s186
        %p188 = scmp.eq.s32.totalorder %s22, 0
        // Predicated region
        $region29: #{tpu_custom_call.1} parent=23 // pred_check
          %p189 = pneg %p188
        $region30: #{tpu_custom_call.1} parent=23 // pred_check_branch
          %191 = sbr.rel (%p189) target = $region32
        $region31: #{tpu_custom_call.1} parent=23 // pred_region
          %192 = vst [vmem:[#allocation2] sm:$0xf] 0.0
          %193 = vst [vmem:[#allocation3] sm:$0xf] 0.0
        $region32: #{tpu_custom_call.1} parent=23 // pred_fallthru
          _
        %v194 = vld [vmem:[%s155] sm:$0xff]
        %v195 = vmul.f32 %v194, %v194
        %v197 = vrot.slane %v194, 4
        %v199 = vadd.f32 %v194, %v197
        %v200 = vmul.f32 %v197, %v197
        %v201 = vadd.f32 %v195, %v200
        %v202 = vld [vmem:[#allocation2] sm:$0xf]
        %v203 = vadd.f32 %v202, %v199
        %204 = vst [vmem:[#allocation2] sm:$0xf] %v203
        %v205 = vld [vmem:[#allocation3] sm:$0xf]
        %v206 = vadd.f32 %v205, %v201
        %207 = vst [vmem:[#allocation3] sm:$0xf] %v206
        // Predicated region
        $region33: #{tpu_custom_call.1} parent=23 // pred_check
          %p208 = pneg %p188
        $region34: #{tpu_custom_call.1} parent=23 // pred_check_branch
          %210 = sbr.rel (%p208) target = $region36
        $region35: #{tpu_custom_call.1} parent=23 // pred_region
          %v211 = vld [vmem:[#allocation2] sm:$0xf]
          %vm212 = vcmask 1043456
          %v213 = vsel %vm212, %v211, 0.0
          %214 = vadd.xlane.f32.xlu0 %v213
          %v215 = vpop.xlane.xlu0 %214
          %vm216 = vcmask 3072
          %217 = vst.msk [vmem:[%s183] sm:$0xf] %vm216, %v215
          %v218 = vld [vmem:[#allocation3] sm:$0xf]
          %v219 = vsel %vm212, %v218, 0.0
          %220 = vadd.xlane.f32.xlu0 %v219
          %v221 = vpop.xlane.xlu0 %220
          %222 = vst.msk [vmem:[%s187] sm:$0xf] %vm216, %v221
        $region36: #{tpu_custom_call.1} parent=23 // pred_fallthru
          _
        %p223 = scmp.lt.s32.totalorder %s21, 1
        %s224 = scalar_select %p223, %s21, 1
        %s225 = smul.addr %s224, 4
        %s226 = scalar_lea.vmem %s1, %s225
        %p227 = scmp.lt.s32.totalorder %s21, 1
        %s228 = scalar_select %p227, %s21, 1
        %s229 = smul.addr %s228, 4
        %s230 = scalar_lea.vmem %s2, %s229
        // Predicated region
        $region37: #{tpu_custom_call.1} parent=23 // pred_check
          %p231 = pneg %p75
        $region38: #{tpu_custom_call.1} parent=23 // pred_check_branch
          %233 = sbr.rel (%p231) target = $region40
        $region39: #{tpu_custom_call.1} parent=23 // pred_region
          _
        $region40: #{tpu_custom_call.1} parent=23 // pred_fallthru
          _
        // Predicated region
        $region41: #{tpu_custom_call.1} parent=23 // pred_check
          %p234 = pneg %p101
        $region42: #{tpu_custom_call.1} parent=23 // pred_check_branch
          %236 = sbr.rel (%p234) target = $region44
        $region43: #{tpu_custom_call.1} parent=23 // pred_region
          _
        $region44: #{tpu_custom_call.1} parent=23 // pred_fallthru
          _
      $region24: #{tpu_custom_call.1} parent=5 // pred_fallthru
        _
      %p237 = scmp.le.s32.totalorder 2, %s12
      // Predicated region
      $region45: #{tpu_custom_call.1} parent=5 // pred_check
        %p238 = pneg %p237
      $region46: #{tpu_custom_call.1} parent=5 // pred_check_branch
        %240 = sbr.rel (%p238) target = $region48
      $region47: #{tpu_custom_call.1} parent=5 // pred_region
        %s241 = ssub.s32 %s12, 2
        // Predicated region
        $region49: #{tpu_custom_call.1} parent=47 // pred_check
          %p242 = pneg %p81
        $region50: #{tpu_custom_call.1} parent=47 // pred_check_branch
          %244 = sbr.rel (%p242) target = $region52
        $region51: #{tpu_custom_call.1} parent=47 // pred_region
          %p245 = scmp.lt.s32.totalorder %s23, 1
          %s246 = scalar_select %p245, %s23, 1
          %s247 = smul.addr %s246, 4
          %s248 = scalar_lea.vmem %s1, %s247
        $region52: #{tpu_custom_call.1} parent=47 // pred_fallthru
          _
        // Predicated region
        $region53: #{tpu_custom_call.1} parent=47 // pred_check
          %p249 = pneg %p107
        $region54: #{tpu_custom_call.1} parent=47 // pred_check_branch
          %251 = sbr.rel (%p249) target = $region56
        $region55: #{tpu_custom_call.1} parent=47 // pred_region
          %p252 = scmp.lt.s32.totalorder %s23, 1
          %s253 = scalar_select %p252, %s23, 1
          %s254 = smul.addr %s253, 4
          %s255 = scalar_lea.vmem %s2, %s254
        $region56: #{tpu_custom_call.1} parent=47 // pred_fallthru
          _
      $region48: #{tpu_custom_call.1} parent=5 // pred_fallthru
        _
    $region6: #{tpu_custom_call.1} parent=1 // loop_footer
      %s16 = sadd.s32 1, %s12
    $region7: #{tpu_custom_call.1} parent=1 // loop_footer_branch
      %11 = sbr.rel target = $region3
    $region8: #{tpu_custom_call.1} parent=1 // loop_exit
      _
    %256 = vsyncpa [#allocation5], 1
    %s257 = scalar_lea.sflag [#allocation5], 1
    %258 = vsyncpa %s257, 1

</llo_original>
